<compile_context>
chip_gen: v6e
topology: v6e:2x2x1
jax: 0.10.0
libtpu: 0.0.40
codegen_flags: <defaults>
</compile_context>

<pallas_src>
import functools

import jax
import jax.numpy as jnp
from jax import lax
from jax.experimental import pallas as pl
from jax.experimental.pallas import tpu as pltpu


def _round_up(x, m):
    return ((x + m - 1) // m) * m


def _vmem_capacity_bytes():
    try:
        cap = int(pltpu.get_tpu_info().vmem_capacity_bytes)
    except Exception:
        cap = 64 << 20          # v7x per-core VMEM; safe lower bound everywhere
    return max(64 << 20, min(cap, 128 << 20))


def _stream_tile(c, hw, bytes_per_col, budget):
    """Largest lane-dense (128-multiple) spatial tile whose per-step VMEM fits budget."""
    t = budget // max(int(bytes_per_col), 1)
    t = max(128, (t // 128) * 128)
    return int(min(t, _round_up(hw, 128)))


def _fused_plan(c, hw, itemsize, budget):
    """(tile, nt) for the fused single-read path, or None if the slab can't fit."""
    hw128 = _round_up(hw, 128)
    spare = budget - c * hw128 * itemsize
    if spare < 4 * c * 128 * itemsize:
        return None
    tile = min(hw128, max(128, (spare // (4 * c * itemsize)) // 128 * 128))
    nt = pl.cdiv(hw, tile)
    if c * nt * tile * itemsize + 4 * c * tile * itemsize > budget:
        tile = 128
        nt = pl.cdiv(hw, tile)
        if c * nt * tile * itemsize + 4 * c * tile * itemsize > budget:
            return None
    return int(tile), int(nt)


# ---------------------------------------------------------------------------
# Fused single-read kernel: pool -> MLP -> scale, x read from HBM exactly once
# ---------------------------------------------------------------------------
def _fused_kernel(x_ref, w1_ref, b1_ref, w2_ref, b2_ref, o_ref,
                  cache, sum_sc, y_sc, *, hw, tile, nt, needs_mask,
                  low_precision_mul, out_dtype):
    t = pl.program_id(1)

    @pl.when(t == 0)
    def _init():
        sum_sc[...] = jnp.zeros_like(sum_sc)

    # Phase 1 (t < nt): stream x tiles, cache them in VMEM, accumulate pool (f32).
    @pl.when(t < nt)
    def _pool():
        xt = x_ref[0]                                        # (C, T), x dtype
        cache[t] = xt                                        # VMEM cache slot t
        xf = xt.astype(jnp.float32)
        if needs_mask:
            col = t * tile + lax.broadcasted_iota(jnp.int32, xf.shape, 1)
            xf = jnp.where(col < hw, xf, 0.0)
        sum_sc[...] += jnp.sum(xf, axis=-1, keepdims=True)

    # Tiny channel MLP + sigmoid once per batch image (channels on sublanes).
    @pl.when(t == nt - 1)
    def _mlp():
        mean = sum_sc[...] * (1.0 / hw)                      # (C, 1)
        h = jnp.dot(w1_ref[...], mean, preferred_element_type=jnp.float32)
        h = jnp.maximum(h + b1_ref[...], 0.0)                # (Cr, 1)
        y = jnp.dot(w2_ref[...], h, preferred_element_type=jnp.float32)
        y_sc[...] = jax.nn.sigmoid(y + b2_ref[...])          # (C, 1)

    # Phase 2 (t >= nt): rescale from the VMEM cache; x is NOT re-read from HBM.
    @pl.when(t >= nt)
    def _scale():
        xt = cache[t - nt]                                   # (C, T)
        if low_precision_mul:
            o_ref[0] = xt * y_sc[...].astype(out_dtype)
        else:
            o_ref[0] = (xt.astype(jnp.float32) * y_sc[...]).astype(out_dtype)


# ---------------------------------------------------------------------------
# Fallback pass A: streaming pool + fused MLP (slab does not fit VMEM)
# ---------------------------------------------------------------------------
def _pool_mlp_kernel(x_ref, w1_ref, b1_ref, w2_ref, b2_ref, y_ref, sum_sc,
                     *, hw, tile, needs_mask):
    t = pl.program_id(1)

    @pl.when(t == 0)
    def _init():
        sum_sc[...] = jnp.zeros_like(sum_sc)

    xf = x_ref[0].astype(jnp.float32)                        # (C, T)
    if needs_mask:
        col = t * tile + lax.broadcasted_iota(jnp.int32, xf.shape, 1)
        xf = jnp.where(col < hw, xf, 0.0)
    sum_sc[...] += jnp.sum(xf, axis=-1, keepdims=True)

    @pl.when(t == pl.num_programs(1) - 1)
    def _mlp():
        mean = sum_sc[...] * (1.0 / hw)                      # (C, 1)
        h = jnp.dot(w1_ref[...], mean, preferred_element_type=jnp.float32)
        h = jnp.maximum(h + b1_ref[...], 0.0)
        y = jnp.dot(w2_ref[...], h, preferred_element_type=jnp.float32)
        y_ref[0] = jax.nn.sigmoid(y + b2_ref[...])           # (C, 1)


# ---------------------------------------------------------------------------
# Fallback pass B: streaming channel-wise rescale (lane-dense stores)
# ---------------------------------------------------------------------------
def _scale_kernel(y_ref, x_ref, o_ref, *, low_precision_mul, out_dtype):
    xt = x_ref[0]                                            # (C, T)
    if low_precision_mul:
        o_ref[0] = xt * y_ref[0].astype(out_dtype)
    else:
        o_ref[0] = (xt.astype(jnp.float32) * y_ref[0]).astype(out_dtype)


# ---------------------------------------------------------------------------
# Wrapper
# ---------------------------------------------------------------------------
@functools.partial(jax.jit, static_argnames=("force_multipass",))
def ca_layer(x_nchw, w1, b1, w2, b2, force_multipass=False):
    """Channel-attention forward (PyTorch CALayer).  x_nchw: (B, C, H, W)."""
    B, C, H, W = x_nchw.shape
    HW = H * W
    Cr = w1.shape[0]
    out_dtype = x_nchw.dtype
    itemsize = int(jnp.dtype(out_dtype).itemsize)
    low_precision_mul = jnp.dtype(out_dtype) == jnp.dtype(jnp.bfloat16)

    x_flat = x_nchw.reshape(B, C, HW)                        # bitcast of NCHW layout
    w1c = w1.astype(jnp.float32)                             # (Cr, C)
    b1c = b1.astype(jnp.float32).reshape(Cr, 1)              # (Cr, 1), sublane-major
    w2c = w2.astype(jnp.float32)                             # (C, Cr)
    b2c = b2.astype(jnp.float32).reshape(C, 1)               # (C, 1)

    cap = _vmem_capacity_bytes()
    vmem_limit = int(min(cap - (8 << 20), 100 << 20))

    plan = None if force_multipass else _fused_plan(C, HW, itemsize, int(cap * 0.55))

    # ---- fused single-read path ----------------------------------------
    if plan is not None:
        tile, nt = plan
        kern = functools.partial(
            _fused_kernel, hw=HW, tile=tile, nt=nt,
            needs_mask=(HW % tile != 0),
            low_precision_mul=low_precision_mul, out_dtype=out_dtype)
        out_flat = pl.pallas_call(
            kern,
            out_shape=jax.ShapeDtypeStruct((B, C, HW), out_dtype),
            grid_spec=pltpu.PrefetchScalarGridSpec(
                num_scalar_prefetch=0,
                grid=(B, 2 * nt),
                in_specs=[
                    pl.BlockSpec((1, C, tile),
                                 lambda b, t: (b, 0, jnp.minimum(t, nt - 1))),
                    pl.BlockSpec((Cr, C), lambda b, t: (0, 0)),
                    pl.BlockSpec((Cr, 1), lambda b, t: (0, 0)),
                    pl.BlockSpec((C, Cr), lambda b, t: (0, 0)),
                    pl.BlockSpec((C, 1), lambda b, t: (0, 0)),
                ],
                out_specs=pl.BlockSpec(
                    (1, C, tile), lambda b, t: (b, 0, jnp.maximum(t - nt, 0))),
                scratch_shapes=[
                    pltpu.VMEM((nt, C, tile), out_dtype),    # per-image x cache
                    pltpu.VMEM((C, 1), jnp.float32),         # pool accumulator
                    pltpu.VMEM((C, 1), jnp.float32),         # attention weights
                ],
            ),
            compiler_params=pltpu.CompilerParams(
                dimension_semantics=("parallel", "arbitrary"),
                vmem_limit_bytes=vmem_limit,
            ),
            cost_estimate=pl.CostEstimate(
                flops=int(2 * B * C * HW + 4 * B * C * Cr),
                transcendentals=int(B * C),
                bytes_accessed=int(2 * B * C * HW * itemsize),
            ),
        )(x_flat, w1c, b1c, w2c, b2c)
        return out_flat.reshape(B, C, H, W)

    # ---- fallback: 2 streaming passes (per-image slab too big for VMEM) ----
    stream_budget = min(cap // 2, 48 << 20)

    # Pass A: pool (+ fused MLP).  Streams only x, so it gets a ~2x bigger tile.
    t_pool = _stream_tile(C, HW, 2 * C * itemsize, stream_budget)
    y = pl.pallas_call(
        functools.partial(_pool_mlp_kernel, hw=HW, tile=t_pool,
                          needs_mask=(HW % t_pool != 0)),
        out_shape=jax.ShapeDtypeStruct((B, C, 1), jnp.float32),
        grid_spec=pltpu.PrefetchScalarGridSpec(
            num_scalar_prefetch=0,
            grid=(B, pl.cdiv(HW, t_pool)),
            in_specs=[
                pl.BlockSpec((1, C, t_pool), lambda b, t: (b, 0, t)),
                pl.BlockSpec((Cr, C), lambda b, t: (0, 0)),
                pl.BlockSpec((Cr, 1), lambda b, t: (0, 0)),
                pl.BlockSpec((C, Cr), lambda b, t: (0, 0)),
                pl.BlockSpec((C, 1), lambda b, t: (0, 0)),
            ],
            out_specs=pl.BlockSpec((1, C, 1), lambda b, t: (b, 0, 0)),
            scratch_shapes=[pltpu.VMEM((C, 1), jnp.float32)],
        ),
        compiler_params=pltpu.CompilerParams(
            dimension_semantics=("parallel", "arbitrary"),
            vmem_limit_bytes=vmem_limit,
        ),
        cost_estimate=pl.CostEstimate(
            flops=int(B * C * HW + 4 * B * C * Cr),
            transcendentals=int(B * C),
            bytes_accessed=int(B * C * HW * itemsize + B * C * 4),
        ),
    )(x_flat, w1c, b1c, w2c, b2c)

    # Pass B: rescale (streams x in and the result out).
    t_scale = _stream_tile(C, HW, 2 * C * (itemsize + itemsize), stream_budget)
    out_flat = pl.pallas_call(
        functools.partial(_scale_kernel, low_precision_mul=low_precision_mul,
                          out_dtype=out_dtype),
        out_shape=jax.ShapeDtypeStruct((B, C, HW), out_dtype),
        grid_spec=pltpu.PrefetchScalarGridSpec(
            num_scalar_prefetch=0,
            grid=(B, pl.cdiv(HW, t_scale)),
            in_specs=[
                pl.BlockSpec((1, C, 1), lambda b, t: (b, 0, 0)),      # y (resident)
                pl.BlockSpec((1, C, t_scale), lambda b, t: (b, 0, t)),
            ],
            out_specs=pl.BlockSpec((1, C, t_scale), lambda b, t: (b, 0, t)),
        ),
        compiler_params=pltpu.CompilerParams(
            dimension_semantics=("parallel", "parallel"),
            vmem_limit_bytes=vmem_limit,
        ),
        cost_estimate=pl.CostEstimate(
            flops=int(B * C * HW),
            transcendentals=0,
            bytes_accessed=int(2 * B * C * HW * itemsize + B * C * 4),
        ),
    )(y, x_flat)
    return out_flat.reshape(B, C, H, W)


# ---------------------------------------------------------------------------
# Reference + test harness
# ---------------------------------------------------------------------------
def _reference(x, w1, b1, w2, b2):
    y = jnp.mean(x, axis=(2, 3), keepdims=True)                     # (B,C,1,1)
    y = jnp.einsum('oc,bcxy->boxy', w1, y) + b1[None, :, None, None]
    y = jnp.maximum(y, 0.0)
    y = jnp.einsum('oc,bcxy->boxy', w2, y) + b2[None, :, None, None]
    return x * jax.nn.sigmoid(y)


def _make_inputs(key, B, C, H, W, reduction):
    Cr = C // reduction
    kx, k1, k2, k3, k4 = jax.random.split(key, 5)
    x = jax.random.normal(kx, (B, C, H, W), dtype=jnp.float32)
    w1 = 0.1 * jax.random.normal(k1, (Cr, C), dtype=jnp.float32)
    b1 = 0.1 * jax.random.normal(k2, (Cr,), dtype=jnp.float32)
    w2 = 0.1 * jax.random.normal(k3, (C, Cr), dtype=jnp.float32)
    b2 = 0.1 * jax.random.normal(k4, (C,), dtype=jnp.float32)
    return x, w1, b1, w2, b2


if __name__ == "__main__":
    key = jax.random.PRNGKey(0)
    k_a, k_b = jax.random.split(key)

    # Case 1: the spec's small shape (B=2, C=4, 16x16, reduction=1) -> fused path.
    x, w1, b1, w2, b2 = _make_inputs(k_a, 2, 4, 16, 16, reduction=1)
    out = jax.block_until_ready(ca_layer(x, w1, b1, w2, b2))
    ref = _reference(x, w1, b1, w2, b2)
    assert out.shape == x.shape
    assert jnp.allclose(out, ref, atol=1e-5, rtol=1e-5), "mismatch (fused, case 1)"

    # Case 2: non-128-multiple spatial size (exercises tail-tile masking), reduction=2.
    x, w1, b1, w2, b2 = _make_inputs(k_b, 2, 8, 20, 20, reduction=2)
    out = jax.block_until_ready(ca_layer(x, w1, b1, w2, b2))
    ref = _reference(x, w1, b1, w2, b2)
    assert out.shape == x.shape
    assert jnp.allclose(out, ref, atol=1e-5, rtol=1e-5), "mismatch (fused, case 2)"

    # Case 3: force the 2-pass streaming fallback (large-slab path) on the same data.
    out = jax.block_until_ready(ca_layer(x, w1, b1, w2, b2, force_multipass=True))
    assert jnp.allclose(out, ref, atol=1e-5, rtol=1e-5), "mismatch (fallback path)"

    print("KERNEL_OK")
</pallas_src>

<mosaic_0001>
module attributes {stable_mosaic.version = 11 : i64} {
  func.func @_fused_kernel(%arg0: i32, %arg1: i32, %arg2: memref<1x4x256xf32, #tpu.memory_space<vmem>>, %arg3: memref<4x4xf32, #tpu.memory_space<vmem>>, %arg4: memref<4x1xf32, #tpu.memory_space<vmem>>, %arg5: memref<4x4xf32, #tpu.memory_space<vmem>>, %arg6: memref<4x1xf32, #tpu.memory_space<vmem>>, %arg7: memref<1x4x256xf32, #tpu.memory_space<vmem>>, %arg8: memref<1x4x256xf32, #tpu.memory_space<vmem>>, %arg9: memref<4x1xf32, #tpu.memory_space<vmem>>, %arg10: memref<4x1xf32, #tpu.memory_space<vmem>>) attributes {dimension_semantics = [#tpu.dimension_semantics<parallel>, #tpu.dimension_semantics<arbitrary>], iteration_bounds = array<i64: 2, 2>, scalar_prefetch = 0 : i64, scratch_operands = 3 : i64, tpu.core_type = #tpu.core_type<tc>, window_params = [{transform_indices = @transform_0, window_bounds = array<i64: 1, 4, 256>}, {pipeline_mode = #tpu.pipeline_mode<synchronous>, transform_indices = @transform_1, window_bounds = array<i64: 4, 4>}, {pipeline_mode = #tpu.pipeline_mode<synchronous>, transform_indices = @transform_2, window_bounds = array<i64: 4, 1>}, {pipeline_mode = #tpu.pipeline_mode<synchronous>, transform_indices = @transform_3, window_bounds = array<i64: 4, 4>}, {pipeline_mode = #tpu.pipeline_mode<synchronous>, transform_indices = @transform_4, window_bounds = array<i64: 4, 1>}, {transform_indices = @transform_5, window_bounds = array<i64: 1, 4, 256>}]} {
    %c0_i32 = arith.constant 0 : i32
    %0 = arith.cmpi eq, %arg1, %c0_i32 : i32
    %1 = arith.extui %0 : i1 to i32
    %c0_i32_0 = arith.constant 0 : i32
    %2 = arith.cmpi ne, %1, %c0_i32_0 : i32
    scf.if %2 {
      %cst = arith.constant 0.000000e+00 : f32
      %12 = vector.broadcast %cst : f32 to vector<4x1xf32>
      %c0 = arith.constant 0 : index
      %c0_6 = arith.constant 0 : index
      %13 = vector.load %arg9[%c0, %c0_6] : memref<4x1xf32, #tpu.memory_space<vmem>>, vector<4x1xf32>
      tpu.vector_store %arg9[%c0, %c0_6], %12 {strides = array<i32>} : memref<4x1xf32, #tpu.memory_space<vmem>>, vector<4x1xf32>,
    } else {
    }
    %c1_i32 = arith.constant 1 : i32
    %3 = arith.cmpi slt, %arg1, %c1_i32 : i32
    %4 = arith.extui %3 : i1 to i32
    %c0_i32_1 = arith.constant 0 : i32
    %5 = arith.cmpi ne, %4, %c0_i32_1 : i32
    scf.if %5 {
      %c0 = arith.constant 0 : index
      %c0_6 = arith.constant 0 : index
      %c0_7 = arith.constant 0 : index
      %12 = vector.load %arg2[%c0, %c0_6, %c0_7] : memref<1x4x256xf32, #tpu.memory_space<vmem>>, vector<1x4x256xf32>
      %13 = vector.shape_cast %12 : vector<1x4x256xf32> to vector<4x256xf32>
      %14 = arith.index_cast %arg1 : i32 to index
      %c0_8 = arith.constant 0 : index
      %c0_9 = arith.constant 0 : index
      %15 = vector.load %arg8[%14, %c0_8, %c0_9] : memref<1x4x256xf32, #tpu.memory_space<vmem>>, vector<1x4x256xf32>
      %16 = vector.shape_cast %15 : vector<1x4x256xf32> to vector<4x256xf32>
      %17 = vector.shape_cast %13 : vector<4x256xf32> to vector<1x4x256xf32>
      tpu.vector_store %arg8[%14, %c0_8, %c0_9], %17 {strides = array<i32>} : memref<1x4x256xf32, #tpu.memory_space<vmem>>, vector<1x4x256xf32>,
      %c0_10 = arith.constant 0 : index
      %c0_11 = arith.constant 0 : index
      %18 = vector.load %arg9[%c0_10, %c0_11] : memref<4x1xf32, #tpu.memory_space<vmem>>, vector<4x1xf32>
      %cst = arith.constant dense<0.000000e+00> : vector<4xf32>
      %19 = vector.multi_reduction <add>, %13, %cst [1] : vector<4x256xf32> to vector<4xf32>
      %20 = vector.shape_cast %19 : vector<4xf32> to vector<4x1xf32>
      %21 = arith.addf %18, %20 : vector<4x1xf32>
      %c0_12 = arith.constant 0 : index
      %c0_13 = arith.constant 0 : index
      %22 = vector.load %arg9[%c0_12, %c0_13] : memref<4x1xf32, #tpu.memory_space<vmem>>, vector<4x1xf32>
      tpu.vector_store %arg9[%c0_12, %c0_13], %21 {strides = array<i32>} : memref<4x1xf32, #tpu.memory_space<vmem>>, vector<4x1xf32>,
    } else {
    }
    %c0_i32_2 = arith.constant 0 : i32
    %6 = arith.cmpi eq, %arg1, %c0_i32_2 : i32
    %7 = arith.extui %6 : i1 to i32
    %c0_i32_3 = arith.constant 0 : i32
    %8 = arith.cmpi ne, %7, %c0_i32_3 : i32
    scf.if %8 {
      %c0 = arith.constant 0 : index
      %c0_6 = arith.constant 0 : index
      %12 = vector.load %arg9[%c0, %c0_6] : memref<4x1xf32, #tpu.memory_space<vmem>>, vector<4x1xf32>
      %cst = arith.constant 3.906250e-03 : f32
      %13 = vector.broadcast %cst : f32 to vector<4x1xf32>
      %14 = arith.mulf %12, %13 : vector<4x1xf32>
      %c0_7 = arith.constant 0 : index
      %c0_8 = arith.constant 0 : index
      %15 = vector.load %arg3[%c0_7, %c0_8] : memref<4x4xf32, #tpu.memory_space<vmem>>, vector<4x4xf32>
      %cst_9 = arith.constant dense<0.000000e+00> : vector<4x1xf32>
      %16 = tpu.matmul %15, %14, %cst_9 {dimension_numbers = #tpu.dot_dimension_numbers<[1], [0], [0], [1], [0, 0, 1, 1], [], []>} : vector<4x4xf32>, vector<4x1xf32>, vector<4x1xf32> -> vector<4x1xf32>
      %c0_10 = arith.constant 0 : index
      %c0_11 = arith.constant 0 : index
      %17 = vector.load %arg4[%c0_10, %c0_11] : memref<4x1xf32, #tpu.memory_space<vmem>>, vector<4x1xf32>
      %18 = arith.addf %16, %17 : vector<4x1xf32>
      %cst_12 = arith.constant 0.000000e+00 : f32
      %19 = vector.broadcast %cst_12 : f32 to vector<4x1xf32>
      %20 = arith.maximumf %18, %19 : vector<4x1xf32>
      %c0_13 = arith.constant 0 : index
      %c0_14 = arith.constant 0 : index
      %21 = vector.load %arg5[%c0_13, %c0_14] : memref<4x4xf32, #tpu.memory_space<vmem>>, vector<4x4xf32>
      %cst_15 = arith.constant dense<0.000000e+00> : vector<4x1xf32>
      %22 = tpu.matmul %21, %20, %cst_15 {dimension_numbers = #tpu.dot_dimension_numbers<[1], [0], [0], [1], [0, 0, 1, 1], [], []>} : vector<4x4xf32>, vector<4x1xf32>, vector<4x1xf32> -> vector<4x1xf32>
      %c0_16 = arith.constant 0 : index
      %c0_17 = arith.constant 0 : index
      %23 = vector.load %arg6[%c0_16, %c0_17] : memref<4x1xf32, #tpu.memory_space<vmem>>, vector<4x1xf32>
      %24 = arith.addf %22, %23 : vector<4x1xf32>
      %25 = arith.negf %24 : vector<4x1xf32>
      %26 = math.exp %25 : vector<4x1xf32>
      %cst_18 = arith.constant 1.000000e+00 : f32
      %27 = vector.broadcast %cst_18 : f32 to vector<4x1xf32>
      %28 = arith.addf %27, %26 : vector<4x1xf32>
      %29 = arith.divf %27, %28 : vector<4x1xf32>
      %c0_19 = arith.constant 0 : index
      %c0_20 = arith.constant 0 : index
      %30 = vector.load %arg10[%c0_19, %c0_20] : memref<4x1xf32, #tpu.memory_space<vmem>>, vector<4x1xf32>
      tpu.vector_store %arg10[%c0_19, %c0_20], %29 {strides = array<i32>} : memref<4x1xf32, #tpu.memory_space<vmem>>, vector<4x1xf32>,
    } else {
    }
    %c1_i32_4 = arith.constant 1 : i32
    %9 = arith.cmpi sge, %arg1, %c1_i32_4 : i32
    %10 = arith.extui %9 : i1 to i32
    %c0_i32_5 = arith.constant 0 : i32
    %11 = arith.cmpi ne, %10, %c0_i32_5 : i32
    scf.if %11 {
      %c1_i32_6 = arith.constant 1 : i32
      %12 = arith.subi %arg1, %c1_i32_6 : i32
      %13 = arith.index_cast %12 : i32 to index
      %c0 = arith.constant 0 : index
      %c0_7 = arith.constant 0 : index
      %14 = vector.load %arg8[%13, %c0, %c0_7] : memref<1x4x256xf32, #tpu.memory_space<vmem>>, vector<1x4x256xf32>
      %15 = vector.shape_cast %14 : vector<1x4x256xf32> to vector<4x256xf32>
      %c0_8 = arith.constant 0 : index
      %c0_9 = arith.constant 0 : index
      %16 = vector.load %arg10[%c0_8, %c0_9] : memref<4x1xf32, #tpu.memory_space<vmem>>, vector<4x1xf32>
      %17 = vector.broadcast %16 : vector<4x1xf32> to vector<4x256xf32>
      %18 = arith.mulf %15, %17 : vector<4x256xf32>
      %c0_10 = arith.constant 0 : index
      %c0_11 = arith.constant 0 : index
      %c0_12 = arith.constant 0 : index
      %19 = vector.load %arg7[%c0_10, %c0_11, %c0_12] : memref<1x4x256xf32, #tpu.memory_space<vmem>>, vector<1x4x256xf32>
      %20 = vector.shape_cast %19 : vector<1x4x256xf32> to vector<4x256xf32>
      %21 = vector.shape_cast %18 : vector<4x256xf32> to vector<1x4x256xf32>
      tpu.vector_store %arg7[%c0_10, %c0_11, %c0_12], %21 {strides = array<i32>} : memref<1x4x256xf32, #tpu.memory_space<vmem>>, vector<1x4x256xf32>,
    } else {
    }
    return
  }
  func.func @transform_0(%arg0: i32, %arg1: i32) -> (i32, i32, i32) {
    %c0_i32 = arith.constant 0 : i32
    %0 = arith.minsi %arg1, %c0_i32 : i32
    %c0_i32_0 = arith.constant 0 : i32
    %c0_i32_1 = arith.constant 0 : i32
    return %arg0, %c0_i32_0, %0 : i32, i32, i32
  }
  func.func @transform_1(%arg0: i32, %arg1: i32) -> (i32, i32) {
    %c0_i32 = arith.constant 0 : i32
    %c0_i32_0 = arith.constant 0 : i32
    %c0_i32_1 = arith.constant 0 : i32
    return %c0_i32, %c0_i32_0 : i32, i32
  }
  func.func @transform_2(%arg0: i32, %arg1: i32) -> (i32, i32) {
    %c0_i32 = arith.constant 0 : i32
    %c0_i32_0 = arith.constant 0 : i32
    %c0_i32_1 = arith.constant 0 : i32
    return %c0_i32, %c0_i32_0 : i32, i32
  }
  func.func @transform_3(%arg0: i32, %arg1: i32) -> (i32, i32) {
    %c0_i32 = arith.constant 0 : i32
    %c0_i32_0 = arith.constant 0 : i32
    %c0_i32_1 = arith.constant 0 : i32
    return %c0_i32, %c0_i32_0 : i32, i32
  }
  func.func @transform_4(%arg0: i32, %arg1: i32) -> (i32, i32) {
    %c0_i32 = arith.constant 0 : i32
    %c0_i32_0 = arith.constant 0 : i32
    %c0_i32_1 = arith.constant 0 : i32
    return %c0_i32, %c0_i32_0 : i32, i32
  }
  func.func @transform_5(%arg0: i32, %arg1: i32) -> (i32, i32, i32) {
    %c1_i32 = arith.constant 1 : i32
    %0 = arith.subi %arg1, %c1_i32 : i32
    %c0_i32 = arith.constant 0 : i32
    %1 = arith.maxsi %0, %c0_i32 : i32
    %c0_i32_0 = arith.constant 0 : i32
    %c0_i32_1 = arith.constant 0 : i32
    return %arg0, %c0_i32_0, %1 : i32, i32, i32
  }
}

</mosaic_0001>

<llo_original>
// kernel: ca_layer.1
$region0: #{ca_layer.1}
  #allocation0 [shape = 'u32[]', space=smem, size = 0x4, offset = 0x4, fixed_abs, tag = 'smem constant byte address 0x4 - core index']
  #allocation1 [shape = 'u32[144,128]{1,0:T(1,128)}', space=vmem, size = 0x12000, scoped, tag = 'internal scratch']
  #allocation2 [shape = 'f32[1,4,256]{2,1,0:T(4,128)}', space=vmem, size = 0x1000, scoped, tag = 'scratch operand']
  #allocation3 [shape = 'f32[4,1]{1,0:T(4,128)}', space=vmem, size = 0x800, scoped, tag = 'scratch operand']
  #allocation4 [shape = 'f32[4,1]{1,0:T(4,128)}', space=vmem, size = 0x800, scoped, tag = 'scratch operand']
  %s0 = inlined_call_operand.vmem [shape: f32[2,4,256], index: 0, kind: input, shape index: {}]
  %s1 = inlined_call_operand.vmem [shape: f32[4,4], index: 1, kind: input, shape index: {}]
  %s2 = inlined_call_operand.vmem [shape: f32[4,1], index: 2, kind: input, shape index: {}]
  %s3 = inlined_call_operand.vmem [shape: f32[4,4], index: 3, kind: input, shape index: {}]
  %s4 = inlined_call_operand.vmem [shape: f32[4,1], index: 4, kind: input, shape index: {}]
  %s5 = inlined_call_operand.vmem [shape: f32[2,4,256], index: 5, kind: output, shape index: {}]
  %s6 = sld [smem:[#allocation0]]
  $region69: #{ca_layer.1} parent=0
    _
  %s8 = ssub.s32 1, %s6
  %s9 = scalar_select 0, %s8, %s6
  loop: start=0, step=1, limit=6
  $region2: #{ca_layer.1} parent=0 // loop_pre_header
    _
  $region3: #{ca_layer.1} parent=0 // loop_header
    %s11 = sphi 0, %s15
    %p12 = scmp.ge.s32.totalorder %s11, 6
    %s18 = sphi 0, %s30
    %s19 = sphi 0, %s26
    %s20 = sphi 0, %s18
    %s21 = sphi 0, %s19
    %s22 = sphi 0, %s20
    %s23 = sphi 0, %s21
    %s39 = sphi 0, %s41
    %s42 = sphi 0, %s39
    %s43 = sphi 0, %s42
    %s59 = sphi 0, %s43
    %s63 = sphi 0, %s63
    %s65 = sphi 0, %s63
    %s66 = sphi 0, %s65
    %s80 = sphi 0, %s66
    %s84 = sphi 0, %s84
    %s86 = sphi 0, %s84
    %s87 = sphi 0, %s86
    %s101 = sphi 0, %s87
    %s105 = sphi 0, %s105
    %s107 = sphi 0, %s105
    %s108 = sphi 0, %s107
    %s122 = sphi 0, %s108
    %s126 = sphi 0, %s126
    %s128 = sphi 0, %s126
    %s129 = sphi 0, %s128
    %s143 = sphi 0, %s129
    %s157 = sphi 0, %s159
    %s160 = sphi 0, %s157
    %s161 = sphi 0, %s160
    %s177 = sphi 0, %s161
  $region4: #{ca_layer.1} parent=0 // loop_header_branch
    %14 = sbr.rel (%p12) target = $region8
  $region5: #{ca_layer.1} parent=0 // loop_body
    %s16 = ssub.s32 %s11, 1
    %s17 = ssub.s32 %s11, 2
    %s24 = sadd.s32 1, %s19
    %p25 = scmp.ge.s32.totalorder %s24, 2
    %s26 = scalar_select %p25, 0, %s24
    %s27 = sadd.s32 1, %s18
    %s28 = scalar_select %p25, %s27, %s18
    %p29 = scmp.ge.s32.totalorder %s28, 2
    %s30 = scalar_select %p29, 0, %s28
    %p31 = scmp.lt.s32.totalorder %s19, 0
    %s32 = scalar_select %p31, %s19, 0
    %p33 = scmp.lt.s32.totalorder %s26, 0
    %s34 = scalar_select %p33, %s26, 0
    %s35 = ssub.s32 %s18, %s30
    %s36 = ssub.s32 %s32, %s34
    %s37 = sor.u32 %s35, %s36
    %p38 = scmp.eq.s32.totalorder %s37, 0
    %s40 = sadd.s32 %s39, 1
    %s41 = scalar_select %p38, %s39, %s40
    %p44 = pneg %p38
    %p45 = scmp.eq.s32.totalorder %s11, 3
    %p46 = por %p44, %p45
    %p47 = scmp.ne.s32.totalorder %s39, %s42
    %p48 = scmp.eq.s32.totalorder %s11, 0
    %p49 = por %p47, %p48
    %p50 = scmp.ne.s32.totalorder %s39, %s42
    %p51 = scmp.eq.s32.totalorder %s16, 3
    %p52 = por %p50, %p51
    %p53 = scmp.ne.s32.totalorder %s42, %s43
    %p54 = scmp.eq.s32.totalorder %s16, 0
    %p55 = por %p53, %p54
    %p56 = scmp.ne.s32.totalorder %s42, %s43
    %p57 = scmp.eq.s32.totalorder %s17, 3
    %p58 = por %p56, %p57
    %p60 = scmp.ne.s32.totalorder %s43, %s59
    %p61 = scmp.eq.s32.totalorder %s17, 0
    %p62 = por %p60, %p61
    %s64 = sadd.s32 %s63, 1
    %p67 = scmp.eq.s32.totalorder %s11, 3
    %p68 = scmp.ne.s32.totalorder %s63, %s65
    %p69 = scmp.eq.s32.totalorder %s11, 0
    %p70 = por %p68, %p69
    %p71 = scmp.ne.s32.totalorder %s63, %s65
    %p72 = scmp.eq.s32.totalorder %s16, 3
    %p73 = por %p71, %p72
    %p74 = scmp.ne.s32.totalorder %s65, %s66
    %p75 = scmp.eq.s32.totalorder %s16, 0
    %p76 = por %p74, %p75
    %p77 = scmp.ne.s32.totalorder %s65, %s66
    %p78 = scmp.eq.s32.totalorder %s17, 3
    %p79 = por %p77, %p78
    %p81 = scmp.ne.s32.totalorder %s66, %s80
    %p82 = scmp.eq.s32.totalorder %s17, 0
    %p83 = por %p81, %p82
    %s85 = sadd.s32 %s84, 1
    %p88 = scmp.eq.s32.totalorder %s11, 3
    %p89 = scmp.ne.s32.totalorder %s84, %s86
    %p90 = scmp.eq.s32.totalorder %s11, 0
    %p91 = por %p89, %p90
    %p92 = scmp.ne.s32.totalorder %s84, %s86
    %p93 = scmp.eq.s32.totalorder %s16, 3
    %p94 = por %p92, %p93
    %p95 = scmp.ne.s32.totalorder %s86, %s87
    %p96 = scmp.eq.s32.totalorder %s16, 0
    %p97 = por %p95, %p96
    %p98 = scmp.ne.s32.totalorder %s86, %s87
    %p99 = scmp.eq.s32.totalorder %s17, 3
    %p100 = por %p98, %p99
    %p102 = scmp.ne.s32.totalorder %s87, %s101
    %p103 = scmp.eq.s32.totalorder %s17, 0
    %p104 = por %p102, %p103
    %s106 = sadd.s32 %s105, 1
    %p109 = scmp.eq.s32.totalorder %s11, 3
    %p110 = scmp.ne.s32.totalorder %s105, %s107
    %p111 = scmp.eq.s32.totalorder %s11, 0
    %p112 = por %p110, %p111
    %p113 = scmp.ne.s32.totalorder %s105, %s107
    %p114 = scmp.eq.s32.totalorder %s16, 3
    %p115 = por %p113, %p114
    %p116 = scmp.ne.s32.totalorder %s107, %s108
    %p117 = scmp.eq.s32.totalorder %s16, 0
    %p118 = por %p116, %p117
    %p119 = scmp.ne.s32.totalorder %s107, %s108
    %p120 = scmp.eq.s32.totalorder %s17, 3
    %p121 = por %p119, %p120
    %p123 = scmp.ne.s32.totalorder %s108, %s122
    %p124 = scmp.eq.s32.totalorder %s17, 0
    %p125 = por %p123, %p124
    %s127 = sadd.s32 %s126, 1
    %p130 = scmp.eq.s32.totalorder %s11, 3
    %p131 = scmp.ne.s32.totalorder %s126, %s128
    %p132 = scmp.eq.s32.totalorder %s11, 0
    %p133 = por %p131, %p132
    %p134 = scmp.ne.s32.totalorder %s126, %s128
    %p135 = scmp.eq.s32.totalorder %s16, 3
    %p136 = por %p134, %p135
    %p137 = scmp.ne.s32.totalorder %s128, %s129
    %p138 = scmp.eq.s32.totalorder %s16, 0
    %p139 = por %p137, %p138
    %p140 = scmp.ne.s32.totalorder %s128, %s129
    %p141 = scmp.eq.s32.totalorder %s17, 3
    %p142 = por %p140, %p141
    %p144 = scmp.ne.s32.totalorder %s129, %s143
    %p145 = scmp.eq.s32.totalorder %s17, 0
    %p146 = por %p144, %p145
    %s147 = ssub.s32 %s19, 1
    %p148 = scmp.gt.s32.totalorder %s147, 0
    %s149 = scalar_select %p148, %s147, 0
    %s150 = ssub.s32 %s26, 1
    %p151 = scmp.gt.s32.totalorder %s150, 0
    %s152 = scalar_select %p151, %s150, 0
    %s153 = ssub.s32 %s18, %s30
    %s154 = ssub.s32 %s149, %s152
    %s155 = sor.u32 %s153, %s154
    %p156 = scmp.eq.s32.totalorder %s155, 0
    %s158 = sadd.s32 %s157, 1
    %s159 = scalar_select %p156, %s157, %s158
    %p162 = pneg %p156
    %p163 = scmp.eq.s32.totalorder %s11, 3
    %p164 = por %p162, %p163
    %p165 = scmp.ne.s32.totalorder %s157, %s160
    %p166 = scmp.eq.s32.totalorder %s11, 0
    %p167 = por %p165, %p166
    %p168 = scmp.ne.s32.totalorder %s157, %s160
    %p169 = scmp.eq.s32.totalorder %s16, 3
    %p170 = por %p168, %p169
    %p171 = scmp.ne.s32.totalorder %s160, %s161
    %p172 = scmp.eq.s32.totalorder %s16, 0
    %p173 = por %p171, %p172
    %p174 = scmp.ne.s32.totalorder %s160, %s161
    %p175 = scmp.eq.s32.totalorder %s17, 3
    %p176 = por %p174, %p175
    %p178 = scmp.ne.s32.totalorder %s161, %s177
    %p179 = scmp.eq.s32.totalorder %s17, 0
    %p180 = por %p178, %p179
    %p181 = scmp.le.s32.totalorder 1, %s11
    %p182 = scmp.lt.s32.totalorder %s11, 5
    %p183 = pnand %p181, %p182
    %p184 = pneg %p183
    // Predicated region
    $region9: #{ca_layer.1} parent=5 // pred_check
      _
    $region10: #{ca_layer.1} parent=5 // pred_check_branch
      %186 = sbr.rel (%p183) target = $region12
    $region11: #{ca_layer.1} parent=5 // pred_region
      %s187 = ssub.s32 %s11, 1
      // Predicated region
      $region13: #{ca_layer.1} parent=11 // pred_check
        %p188 = pneg %p76
      $region14: #{ca_layer.1} parent=11 // pred_check_branch
        %190 = sbr.rel (%p188) target = $region16
      $region15: #{ca_layer.1} parent=11 // pred_region
        _
      $region16: #{ca_layer.1} parent=11 // pred_fallthru
        _
      // Predicated region
      $region17: #{ca_layer.1} parent=11 // pred_check
        %p191 = pneg %p97
      $region18: #{ca_layer.1} parent=11 // pred_check_branch
        %193 = sbr.rel (%p191) target = $region20
      $region19: #{ca_layer.1} parent=11 // pred_region
        _
      $region20: #{ca_layer.1} parent=11 // pred_fallthru
        _
      // Predicated region
      $region21: #{ca_layer.1} parent=11 // pred_check
        %p194 = pneg %p118
      $region22: #{ca_layer.1} parent=11 // pred_check_branch
        %196 = sbr.rel (%p194) target = $region24
      $region23: #{ca_layer.1} parent=11 // pred_region
        _
      $region24: #{ca_layer.1} parent=11 // pred_fallthru
        _
      // Predicated region
      $region25: #{ca_layer.1} parent=11 // pred_check
        %p197 = pneg %p139
      $region26: #{ca_layer.1} parent=11 // pred_check_branch
        %199 = sbr.rel (%p197) target = $region28
      $region27: #{ca_layer.1} parent=11 // pred_region
        _
      $region28: #{ca_layer.1} parent=11 // pred_fallthru
        _
    $region12: #{ca_layer.1} parent=5 // pred_fallthru
      _
    %p200 = scmp.lt.s32.totalorder %s11, 4
    // Predicated region
    $region29: #{ca_layer.1} parent=5 // pred_check
      %p201 = pneg %p200
    $region30: #{ca_layer.1} parent=5 // pred_check_branch
      %203 = sbr.rel (%p201) target = $region32
    $region31: #{ca_layer.1} parent=5 // pred_region
      // Predicated region
      $region33: #{ca_layer.1} parent=31 // pred_check
        %p204 = pneg %p49
      $region34: #{ca_layer.1} parent=31 // pred_check_branch
        %206 = sbr.rel (%p204) target = $region36
      $region35: #{ca_layer.1} parent=31 // pred_region
        %p207 = scmp.lt.s32.totalorder %s19, 0
        %s208 = scalar_select %p207, %s19, 0
        %s209 = smul.u32 2, %s208
        %p210 = scmp.lt.s32.totalorder %s18, 1
        %s211 = scalar_select %p210, %s18, 1
        %p212 = scmp.lt.s32.totalorder %s209, 1
        %s213 = scalar_select %p212, %s209, 1
        %s214 = smul.addr %s211, 2
        %s215 = sadd.s32 %s213, %s214
        %s216 = smul.addr %s215, 4
        %s217 = scalar_lea.vmem %s0, %s216
        %p218 = scmp.lt.s32.totalorder %s19, 0
        %s219 = scalar_select %p218, %s19, 0
        %s220 = smul.u32 2, %s219
      $region36: #{ca_layer.1} parent=31 // pred_fallthru
        _
    $region32: #{ca_layer.1} parent=5 // pred_fallthru
      _
    %p221 = scmp.le.s32.totalorder 1, %s11
    %p222 = scmp.lt.s32.totalorder %s11, 5
    %p223 = pnand %p221, %p222
    %p224 = pneg %p223
    // Predicated region
    $region37: #{ca_layer.1} parent=5 // pred_check
      _
    $region38: #{ca_layer.1} parent=5 // pred_check_branch
      %226 = sbr.rel (%p223) target = $region40
    $region39: #{ca_layer.1} parent=5 // pred_region
      %s227 = ssub.s32 %s11, 1
      %p228 = scmp.lt.s32.totalorder %s21, 0
      %s229 = scalar_select %p228, %s21, 0
      %s230 = smul.u32 2, %s229
      %p231 = scmp.lt.s32.totalorder %s20, 1
      %s232 = scalar_select %p231, %s20, 1
      %p233 = scmp.lt.s32.totalorder %s230, 1
      %s234 = scalar_select %p233, %s230, 1
      %s235 = smul.addr %s232, 2
      %s236 = sadd.s32 %s234, %s235
      %s237 = smul.addr %s236, 4
      %s238 = scalar_lea.vmem %s0, %s237
      %p239 = pneg %p55
      %p240 = pneg %p52
      %p241 = pneg %p76
      %p242 = pneg %p73
      %p243 = pneg %p97
      %p244 = pneg %p94
      %p245 = pneg %p118
      %p246 = pneg %p115
      %p247 = pneg %p139
      %p248 = pneg %p136
      %p249 = pneg %p173
      %p250 = pneg %p170
      %s251 = ssub.s32 %s21, 1
      %p252 = scmp.gt.s32.totalorder %s251, 0
      %s253 = scalar_select %p252, %s251, 0
      %s254 = smul.u32 2, %s253
      %p255 = scmp.lt.s32.totalorder %s20, 1
      %s256 = scalar_select %p255, %s20, 1
      %p257 = scmp.lt.s32.totalorder %s254, 1
      %s258 = scalar_select %p257, %s254, 1
      %s259 = smul.addr %s256, 2
      %s260 = sadd.s32 %s258, %s259
      %s261 = smul.addr %s260, 4
      %s262 = scalar_lea.vmem %s5, %s261
      %p263 = scmp.lt.s32.totalorder %s21, 0
      %s264 = scalar_select %p263, %s21, 0
      %s265 = smul.u32 2, %s264
      %p266 = scmp.lt.s32.totalorder %s20, 1
      %s267 = scalar_select %p266, %s20, 1
      %p268 = scmp.lt.s32.totalorder %s265, 1
      %s269 = scalar_select %p268, %s265, 1
      %s270 = smul.addr %s267, 2
      %s271 = sadd.s32 %s269, %s270
      %s272 = smul.addr %s271, 4
      %s273 = scalar_lea.vmem %s0, %s272
      %p274 = scmp.lt.s32.totalorder %s21, 0
      %s275 = scalar_select %p274, %s21, 0
      %s276 = smul.u32 2, %s275
      %s277 = ssub.s32 %s21, 1
      %p278 = scmp.gt.s32.totalorder %s277, 0
      %s279 = scalar_select %p278, %s277, 0
      %s280 = smul.u32 2, %s279
      %p281 = scmp.lt.s32.totalorder %s20, 1
      %s282 = scalar_select %p281, %s20, 1
      %p283 = scmp.lt.s32.totalorder %s280, 1
      %s284 = scalar_select %p283, %s280, 1
      %s285 = smul.addr %s282, 2
      %s286 = sadd.s32 %s284, %s285
      %s287 = smul.addr %s286, 4
      %s288 = scalar_lea.vmem %s5, %s287
      %s289 = ssub.s32 %s21, 1
      %p290 = scmp.gt.s32.totalorder %s289, 0
      %s291 = scalar_select %p290, %s289, 0
      %s292 = smul.u32 2, %s291
      %p293 = scmp.eq.s32.totalorder %s21, 0
      // Predicated region
      $region41: #{ca_layer.1} parent=39 // pred_check
        %p294 = pneg %p293
      $region42: #{ca_layer.1} parent=39 // pred_check_branch
        %296 = sbr.rel (%p294) target = $region44
      $region43: #{ca_layer.1} parent=39 // pred_region
        %vm297 = vcmask 3072
        %298 = vst.msk [vmem:[#allocation3] sm:$0xf] %vm297, 0.0
      $region44: #{ca_layer.1} parent=39 // pred_fallthru
        _
      %p299 = scmp.lt.s32.totalorder %s21, 1
      // Predicated region
      $region45: #{ca_layer.1} parent=39 // pred_check
        %p300 = pneg %p299
      $region46: #{ca_layer.1} parent=39 // pred_check_branch
        %302 = sbr.rel (%p300) target = $region48
      $region47: #{ca_layer.1} parent=39 // pred_region
        %v303 = vld [vmem:[%s273] sm:$0xff]
        %s304 = smul.u32 %s21, 2
        %s305 = smul.addr %s304, 4
        %s306 = scalar_lea.vmem [#allocation2], %s305
        %307 = vst [vmem:[%s306] sm:$0xff] %v303
        %v308 = vld [vmem:[#allocation3] sm:$0xf]
        %v310 = vcombine.high %v303, %v303
        %vm312 = vcmask 1043456
        %v313 = vsel %vm312, %v303, 0.0
        %v314 = vsel %vm312, %v310, 0.0
        %v315 = vadd.f32 %v313, %v314
        %316 = vadd.xlane.f32.xlu0 %v315
        %v317 = vpop.xlane.xlu0 %316
        %v318 = vadd.f32 %v308, %v317
        %vm319 = vcmask 3072
        %320 = vst.msk [vmem:[#allocation3] sm:$0xf] %vm319, %v318
      $region48: #{ca_layer.1} parent=39 // pred_fallthru
        _
      // Predicated region
      $region49: #{ca_layer.1} parent=39 // pred_check
        %p321 = pneg %p293
      $region50: #{ca_layer.1} parent=39 // pred_check_branch
        %323 = sbr.rel (%p321) target = $region52
      $region51: #{ca_layer.1} parent=39 // pred_region
        %v324 = vld [vmem:[#allocation3] sm:$0xf]
        %v325 = vmul.f32 %v324, 0.00390625
        %v326 = vld [vmem:[%s1] sm:$0xf]
        %v327 = vld [vmem:[%s2] sm:$0xf]
        %vm328 = vcmask 31744
        %v330 = vsel %vm328, %v326, 0
        %vm332 = vcmask 1043456
        %v334 = vsel %vm332, %v325, 0
        %336 = vmatprep.subr.mxu0 0.0
        %337 = vmatpush1.msra.mxu0 0.0
        %338 = vmatprep.subr.mxu0 0.0
        %339 = vmatpush1.msra.mxu0 0.0
        %340 = vmatprep.subr.mxu0 0.0
        %341 = vmatpush1.msra.mxu0 0.0
        %342 = vmatprep.subr.mxu0 0.0
        %343 = vmatpush1.msra.mxu0 0.0
        %344 = vmatprep.subr.mxu0 0.0
        %345 = vmatpush1.msra.mxu0 0.0
        %346 = vmatprep.subr.mxu0 0.0
        %347 = vmatpush1.msra.mxu0 0.0
        %348 = vmatprep.subr.mxu0 0.0
        %349 = vmatpush1.msra.mxu0 0.0
        %350 = vmatprep.subr.mxu0 0.0
        %351 = vmatpush1.msra.mxu0 0.0
        %352 = vmatprep.subr.mxu0 0.0
        %353 = vmatpush1.msra.mxu0 0.0
        %354 = vmatprep.subr.mxu0 0.0
        %355 = vmatpush1.msra.mxu0 0.0
        %356 = vmatprep.subr.mxu0 0.0
        %357 = vmatpush1.msra.mxu0 0.0
        %358 = vmatprep.subr.mxu0 0.0
        %359 = vmatpush1.msra.mxu0 0.0
        %360 = vmatprep.subr.mxu0 0.0
        %361 = vmatpush1.msra.mxu0 0.0
        %362 = vmatprep.subr.mxu0 0.0
        %363 = vmatpush1.msra.mxu0 0.0
        %364 = vmatprep.subr.mxu0 0.0
        %365 = vmatpush1.msra.mxu0 0.0
        %366 = vmatprep.subr.mxu0 0.0
        %367 = vmatpush1.msra.mxu0 %v334
        %368 = vmatprep.subr.mxu0 0.0
        %369 = vmatpush2.msra.mxu0 0.0
        %370 = vmatprep.subr.mxu0 0.0
        %371 = vmatpush2.msra.mxu0 0.0
        %372 = vmatprep.subr.mxu0 0.0
        %373 = vmatpush2.msra.mxu0 0.0
        %374 = vmatprep.subr.mxu0 0.0
        %375 = vmatpush2.msra.mxu0 0.0
        %376 = vmatprep.subr.mxu0 0.0
        %377 = vmatpush2.msra.mxu0 0.0
        %378 = vmatprep.subr.mxu0 0.0
        %379 = vmatpush2.msra.mxu0 0.0
        %380 = vmatprep.subr.mxu0 0.0
        %381 = vmatpush2.msra.mxu0 0.0
        %382 = vmatprep.subr.mxu0 0.0
        %383 = vmatpush2.msra.mxu0 0.0
        %384 = vmatprep.subr.mxu0 0.0
        %385 = vmatpush2.msra.mxu0 0.0
        %386 = vmatprep.subr.mxu0 0.0
        %387 = vmatpush2.msra.mxu0 0.0
        %388 = vmatprep.subr.mxu0 0.0
        %389 = vmatpush2.msra.mxu0 0.0
        %390 = vmatprep.subr.mxu0 0.0
        %391 = vmatpush2.msra.mxu0 0.0
        %392 = vmatprep.subr.mxu0 0.0
        %393 = vmatpush2.msra.mxu0 0.0
        %394 = vmatprep.subr.mxu0 0.0
        %395 = vmatpush2.msra.mxu0 0.0
        %396 = vmatprep.subr.mxu0 0.0
        %397 = vmatpush2.msra.mxu0 0.0
        %398 = vmatprep.subr.mxu0 0.0
        %399 = vmatpush2.msra.mxu0 0.0
        %400 = vmatprep.mubr.f32.mxu0 0.0
        %401 = vmatmul.mubr.f32.gmra.mxu0 %v330
        %v402 = vpop.f32.mrf.mxu0
        %v403 = vadd.f32 %v327, %v402
        %v404 = vpop.f32.mrf.mxu0
        %405 = vdwg.mxu0
        %v406 = vmax.f32 %v403, 0.0
        %v407 = vld [vmem:[%s3] sm:$0xf]
        %v408 = vld [vmem:[%s4] sm:$0xf]
        %v410 = vsel %vm328, %v407, 0
        %v413 = vsel %vm332, %v406, 0
        %415 = vmatprep.subr.mxu0 0.0
        %416 = vmatpush1.msra.mxu0 0.0
        %417 = vmatprep.subr.mxu0 0.0
        %418 = vmatpush1.msra.mxu0 0.0
        %419 = vmatprep.subr.mxu0 0.0
        %420 = vmatpush1.msra.mxu0 0.0
        %421 = vmatprep.subr.mxu0 0.0
        %422 = vmatpush1.msra.mxu0 0.0
        %423 = vmatprep.subr.mxu0 0.0
        %424 = vmatpush1.msra.mxu0 0.0
        %425 = vmatprep.subr.mxu0 0.0
        %426 = vmatpush1.msra.mxu0 0.0
        %427 = vmatprep.subr.mxu0 0.0
        %428 = vmatpush1.msra.mxu0 0.0
        %429 = vmatprep.subr.mxu0 0.0
        %430 = vmatpush1.msra.mxu0 0.0
        %431 = vmatprep.subr.mxu0 0.0
        %432 = vmatpush1.msra.mxu0 0.0
        %433 = vmatprep.subr.mxu0 0.0
        %434 = vmatpush1.msra.mxu0 0.0
        %435 = vmatprep.subr.mxu0 0.0
        %436 = vmatpush1.msra.mxu0 0.0
        %437 = vmatprep.subr.mxu0 0.0
        %438 = vmatpush1.msra.mxu0 0.0
        %439 = vmatprep.subr.mxu0 0.0
        %440 = vmatpush1.msra.mxu0 0.0
        %441 = vmatprep.subr.mxu0 0.0
        %442 = vmatpush1.msra.mxu0 0.0
        %443 = vmatprep.subr.mxu0 0.0
        %444 = vmatpush1.msra.mxu0 0.0
        %445 = vmatprep.subr.mxu0 0.0
        %446 = vmatpush1.msra.mxu0 %v413
        %447 = vmatprep.subr.mxu0 0.0
        %448 = vmatpush2.msra.mxu0 0.0
        %449 = vmatprep.subr.mxu0 0.0
        %450 = vmatpush2.msra.mxu0 0.0
        %451 = vmatprep.subr.mxu0 0.0
        %452 = vmatpush2.msra.mxu0 0.0
        %453 = vmatprep.subr.mxu0 0.0
        %454 = vmatpush2.msra.mxu0 0.0
        %455 = vmatprep.subr.mxu0 0.0
        %456 = vmatpush2.msra.mxu0 0.0
        %457 = vmatprep.subr.mxu0 0.0
        %458 = vmatpush2.msra.mxu0 0.0
        %459 = vmatprep.subr.mxu0 0.0
        %460 = vmatpush2.msra.mxu0 0.0
        %461 = vmatprep.subr.mxu0 0.0
        %462 = vmatpush2.msra.mxu0 0.0
        %463 = vmatprep.subr.mxu0 0.0
        %464 = vmatpush2.msra.mxu0 0.0
        %465 = vmatprep.subr.mxu0 0.0
        %466 = vmatpush2.msra.mxu0 0.0
        %467 = vmatprep.subr.mxu0 0.0
        %468 = vmatpush2.msra.mxu0 0.0
        %469 = vmatprep.subr.mxu0 0.0
        %470 = vmatpush2.msra.mxu0 0.0
        %471 = vmatprep.subr.mxu0 0.0
        %472 = vmatpush2.msra.mxu0 0.0
        %473 = vmatprep.subr.mxu0 0.0
        %474 = vmatpush2.msra.mxu0 0.0
        %475 = vmatprep.subr.mxu0 0.0
        %476 = vmatpush2.msra.mxu0 0.0
        %477 = vmatprep.subr.mxu0 0.0
        %478 = vmatpush2.msra.mxu0 0.0
        %479 = vmatprep.mubr.f32.mxu0 0.0
        %480 = vmatmul.mubr.f32.gmra.mxu0 %v410
        %v481 = vpop.f32.mrf.mxu0
        %v482 = vadd.f32 %v408, %v481
        %v483 = vpop.f32.mrf.mxu0
        %484 = vdwg.mxu0
        %v485 = vxor.u32 %v482, 2147483648
        %v486 = vmul.f32 %v485, 1.442695
        %v487 = vpow.pop %v486
        %v488 = vadd.f32 %v487, 1.0
        %v489 = vrcp.pop %v488
        %v490 = vmul.f32 1.0, %v489
        %vm491 = vcmask 3072
        %492 = vst.msk [vmem:[#allocation4] sm:$0xf] %vm491, %v490
      $region52: #{ca_layer.1} parent=39 // pred_fallthru
        _
      %p493 = scmp.ge.s32.totalorder %s21, 1
      // Predicated region
      $region53: #{ca_layer.1} parent=39 // pred_check
        %p494 = pneg %p493
      $region54: #{ca_layer.1} parent=39 // pred_check_branch
        %496 = sbr.rel (%p494) target = $region56
      $region55: #{ca_layer.1} parent=39 // pred_region
        %s497 = ssub.s32 %s21, 1
        %s498 = smul.u32 %s497, 2
        %s499 = smul.addr %s498, 4
        %s500 = scalar_lea.vmem [#allocation2], %s499
        %v501 = vld [vmem:[%s500] sm:$0xff]
        %v502 = vld [vmem:[#allocation4] sm:$0xf]
        %504 = vset.pattern.permute.xlu0 0
        %505 = vperm.xlu0 %504, %v502
        %v506 = vpop.permute.xlu0 %505
        %v508 = vunpack.c.l.s4 839922192
        %v509 = vunpack.c.0.s8 %v508
        %v510 = vlaneseq
        %v511 = vshrl.u32 %v510, 7
        %v512 = vsub.s32 %v509, %v511
        %v513 = vrot.slane %v506, %v512
        %v515 = vmul.f32 %v501, %v513
        %516 = vst [vmem:[%s288] sm:$0xff] %v515
      $region56: #{ca_layer.1} parent=39 // pred_fallthru
        _
      %s517 = ssub.s32 %s21, 1
      %p518 = scmp.gt.s32.totalorder %s517, 0
      %s519 = scalar_select %p518, %s517, 0
      %s520 = smul.u32 2, %s519
      %p521 = scmp.lt.s32.totalorder %s20, 1
      %s522 = scalar_select %p521, %s20, 1
      %p523 = scmp.lt.s32.totalorder %s520, 1
      %s524 = scalar_select %p523, %s520, 1
      %s525 = smul.addr %s522, 2
      %s526 = sadd.s32 %s524, %s525
      %s527 = smul.addr %s526, 4
      %s528 = scalar_lea.vmem %s5, %s527
      // Predicated region
      $region57: #{ca_layer.1} parent=39 // pred_check
        %p529 = pneg %p170
      $region58: #{ca_layer.1} parent=39 // pred_check_branch
        %531 = sbr.rel (%p529) target = $region60
      $region59: #{ca_layer.1} parent=39 // pred_region
        %s532 = ssub.s32 %s21, 1
        %p533 = scmp.gt.s32.totalorder %s532, 0
        %s534 = scalar_select %p533, %s532, 0
        %s535 = smul.u32 2, %s534
      $region60: #{ca_layer.1} parent=39 // pred_fallthru
        _
    $region40: #{ca_layer.1} parent=5 // pred_fallthru
      _
    %p536 = scmp.le.s32.totalorder 2, %s11
    // Predicated region
    $region61: #{ca_layer.1} parent=5 // pred_check
      %p537 = pneg %p536
    $region62: #{ca_layer.1} parent=5 // pred_check_branch
      %539 = sbr.rel (%p537) target = $region64
    $region63: #{ca_layer.1} parent=5 // pred_region
      %s540 = ssub.s32 %s11, 2
      // Predicated region
      $region65: #{ca_layer.1} parent=63 // pred_check
        %p541 = pneg %p176
      $region66: #{ca_layer.1} parent=63 // pred_check_branch
        %543 = sbr.rel (%p541) target = $region68
      $region67: #{ca_layer.1} parent=63 // pred_region
        %s544 = ssub.s32 %s23, 1
        %p545 = scmp.gt.s32.totalorder %s544, 0
        %s546 = scalar_select %p545, %s544, 0
        %s547 = smul.u32 2, %s546
        %p548 = scmp.lt.s32.totalorder %s22, 1
        %s549 = scalar_select %p548, %s22, 1
        %p550 = scmp.lt.s32.totalorder %s547, 1
        %s551 = scalar_select %p550, %s547, 1
        %s552 = smul.addr %s549, 2
        %s553 = sadd.s32 %s551, %s552
        %s554 = smul.addr %s553, 4
        %s555 = scalar_lea.vmem %s5, %s554
      $region68: #{ca_layer.1} parent=63 // pred_fallthru
        _
    $region64: #{ca_layer.1} parent=5 // pred_fallthru
      _
  $region6: #{ca_layer.1} parent=0 // loop_footer
    %s15 = sadd.s32 1, %s11
  $region7: #{ca_layer.1} parent=0 // loop_footer_branch
    %10 = sbr.rel target = $region3
  $region8: #{ca_layer.1} parent=0 // loop_exit
    _

</llo_original>
